<compile_context>
chip_gen: v6e
topology: v6e:2x2x1
jax: 0.10.0
libtpu: 0.0.40
codegen_flags: <defaults>
</compile_context>

<pallas_src>
import functools

import jax
import jax.numpy as jnp
from jax.experimental import pallas as pl
from jax.experimental.pallas import tpu as pltpu


def _sublayer_connection_kernel(x_ref, a_ref, b_ref, w_ref, wb_ref, *rest,
                                eps, dropout_rate):
    # x_ref: (TS, F) rows; a_ref/b_ref/wb_ref: (1, F); w_ref: (F, F) bf16.
    if dropout_rate > 0.0:
        bits_ref, o_ref = rest
    else:
        (o_ref,) = rest

    x = x_ref[...]                                   # native dtype DMA
    xf = x.astype(jnp.float32)                       # (TS, F) fp32 in-register
    F = xf.shape[-1]

    # ---- LayerNorm (torch-style: unbiased N-1 variance, eps added to std) ----
    mean = jnp.mean(xf, axis=-1, keepdims=True)      # (TS, 1)
    diff = xf - mean
    var = jnp.sum(diff * diff, axis=-1, keepdims=True) * (1.0 / (F - 1))
    std = jnp.sqrt(var)
    inv = 1.0 / (std + eps)                          # one reciprocal per row
    y = a_ref[...] * (diff * inv) + b_ref[...]       # (TS, F) fp32

    # ---- sublayer: Linear(size, size); bf16 operands, fp32 accumulation ----
    z = jnp.dot(y.astype(jnp.bfloat16), w_ref[...],
                preferred_element_type=jnp.float32) + wb_ref[...]

    # ---- dropout: integer-threshold test on prefed uint32 bits ----
    if dropout_rate > 0.0:
        keep_prob = 1.0 - dropout_rate
        threshold = jnp.uint32(min(int(keep_prob * 2**32), 2**32 - 1))
        bits = bits_ref[...]                         # (TS, F) uint32
        z = jnp.where(bits < threshold, z * jnp.float32(1.0 / keep_prob),
                      jnp.float32(0.0))

    # ---- residual ----
    o_ref[...] = (xf + z).astype(o_ref.dtype)


def sublayer_connection(x, a_2, b_2, w, w_b, *, eps=1e-6, dropout_rate=0.0,
                        dropout_key=None, row_tile=256, vmem_limit_bytes=None):
    """x: (B, S, F); a_2, b_2, w_b: (F,); w: (F, F)."""
    B, S, F = x.shape
    assert F > 1, "LayerNorm with unbiased variance needs F > 1"
    M = B * S
    x2 = x.reshape(M, F)

    # Row tile: multiple of 8 sublanes (ideally 128+ for v5e MXU fill), or all rows.
    ts = min(row_tile, M)
    assert M % ts == 0 and (ts % 8 == 0 or ts == M), (
        f"row count {M} must tile evenly by {ts} (multiple of 8)")

    a2 = a_2.reshape(1, F).astype(jnp.float32)
    b2 = b_2.reshape(1, F).astype(jnp.float32)
    wb = w_b.reshape(1, F).astype(jnp.float32)
    w_bf16 = w.astype(jnp.bfloat16)                  # bf16 MXU operand, half the VMEM

    grid = (M // ts,)
    in_specs = [
        pl.BlockSpec((ts, F), lambda i: (i, 0)),     # x rows
        pl.BlockSpec((1, F), lambda i: (0, 0)),      # a_2
        pl.BlockSpec((1, F), lambda i: (0, 0)),      # b_2
        pl.BlockSpec((F, F), lambda i: (0, 0)),      # W (bf16)
        pl.BlockSpec((1, F), lambda i: (0, 0)),      # W bias
    ]
    operands = [x2, a2, b2, w_bf16, wb]

    if dropout_rate > 0.0:
        if dropout_key is None:
            raise ValueError("dropout_rate > 0 requires dropout_key")
        bits = jax.random.bits(dropout_key, (M, F), dtype=jnp.uint32)
        in_specs.append(pl.BlockSpec((ts, F), lambda i: (i, 0)))
        operands.append(bits)

    kernel = functools.partial(_sublayer_connection_kernel,
                               eps=eps, dropout_rate=dropout_rate)

    compiler_kwargs = dict(dimension_semantics=("parallel",))  # v7x: shard rows on 2 TCs
    if vmem_limit_bytes is not None:                           # e.g. 64<<20 on v6e only
        compiler_kwargs["vmem_limit_bytes"] = vmem_limit_bytes

    out2 = pl.pallas_call(
        kernel,
        out_shape=jax.ShapeDtypeStruct((M, F), x.dtype),
        grid=grid,
        in_specs=in_specs,
        out_specs=pl.BlockSpec((ts, F), lambda i: (i, 0)),
        compiler_params=pltpu.CompilerParams(**compiler_kwargs),
    )(*operands)
    return out2.reshape(B, S, F)


def _reference_no_dropout(x, a_2, b_2, w, w_b, eps=1e-6):
    """Pure-JAX fp32 reference with torch LayerNorm semantics (dropout disabled)."""
    xf = x.astype(jnp.float32)
    mean = jnp.mean(xf, axis=-1, keepdims=True)
    diff = xf - mean
    var = jnp.sum(diff * diff, axis=-1, keepdims=True) / (x.shape[-1] - 1)
    std = jnp.sqrt(var)
    y = a_2 * diff / (std + eps) + b_2
    z = jnp.einsum("bsf,fg->bsg", y, w) + w_b
    return (xf + z).astype(x.dtype)


if __name__ == "__main__":
    B, S, F = 2, 8, 128          # small, but lane-dense (F % 128 == 0)
    key = jax.random.PRNGKey(0)
    kx, kw, ka, kb, kd = jax.random.split(key, 5)

    x = jax.random.normal(kx, (B, S, F), dtype=jnp.float32)

    # Parameters (same shapes as the module's __init__; slightly perturbed so the
    # LayerNorm affine path is actually exercised):
    a_2 = 1.0 + 0.1 * jax.random.normal(ka, (F,), dtype=jnp.float32)
    b_2 = 0.1 * jax.random.normal(kb, (F,), dtype=jnp.float32)
    w = jax.random.normal(kw, (F, F), dtype=jnp.float32) / jnp.sqrt(F)
    w_b = 0.1 * jnp.ones((F,), dtype=jnp.float32)

    # Deterministic path (dropout disabled) vs. fp32 reference.  Tolerance covers
    # the intentional bf16 MXU operands (fp32 accumulation).
    out_det = sublayer_connection(x, a_2, b_2, w, w_b, eps=1e-6, dropout_rate=0.0)
    out_det = jax.block_until_ready(out_det)
    ref = _reference_no_dropout(x, a_2, b_2, w, w_b, eps=1e-6)
    assert jnp.allclose(out_det, ref, atol=5e-2, rtol=5e-2), "mismatch vs reference"

    # Training path with dropout active (uint32 bits + integer threshold in-kernel).
    out = sublayer_connection(x, a_2, b_2, w, w_b, eps=1e-6, dropout_rate=0.1,
                              dropout_key=kd)
    out = jax.block_until_ready(out)
    assert bool(jnp.all(jnp.isfinite(out)))

    print("KERNEL_OK")
</pallas_src>

<mosaic_0001>
module attributes {stable_mosaic.version = 11 : i64} {
  func.func @_sublayer_connection_kernel(%arg0: i32, %arg1: memref<16x128xf32, #tpu.memory_space<vmem>>, %arg2: memref<1x128xf32, #tpu.memory_space<vmem>>, %arg3: memref<1x128xf32, #tpu.memory_space<vmem>>, %arg4: memref<128x128xbf16, #tpu.memory_space<vmem>>, %arg5: memref<1x128xf32, #tpu.memory_space<vmem>>, %arg6: memref<16x128xf32, #tpu.memory_space<vmem>>) attributes {dimension_semantics = [#tpu.dimension_semantics<parallel>], iteration_bounds = array<i64: 1>, scalar_prefetch = 0 : i64, scratch_operands = 0 : i64, tpu.core_type = #tpu.core_type<tc>, window_params = [{transform_indices = @transform_0, window_bounds = array<i64: 16, 128>}, {pipeline_mode = #tpu.pipeline_mode<synchronous>, transform_indices = @transform_1, window_bounds = array<i64: 1, 128>}, {pipeline_mode = #tpu.pipeline_mode<synchronous>, transform_indices = @transform_2, window_bounds = array<i64: 1, 128>}, {pipeline_mode = #tpu.pipeline_mode<synchronous>, transform_indices = @transform_3, window_bounds = array<i64: 128, 128>}, {pipeline_mode = #tpu.pipeline_mode<synchronous>, transform_indices = @transform_4, window_bounds = array<i64: 1, 128>}, {transform_indices = @transform_5, window_bounds = array<i64: 16, 128>}]} {
    %c0 = arith.constant 0 : index
    %c0_0 = arith.constant 0 : index
    %0 = vector.load %arg1[%c0, %c0_0] : memref<16x128xf32, #tpu.memory_space<vmem>>, vector<16x128xf32>
    %cst = arith.constant dense<0.000000e+00> : vector<16xf32>
    %1 = vector.multi_reduction <add>, %0, %cst [1] : vector<16x128xf32> to vector<16xf32>
    %2 = vector.shape_cast %1 : vector<16xf32> to vector<16x1xf32>
    %cst_1 = arith.constant 1.280000e+02 : f32
    %3 = vector.broadcast %cst_1 : f32 to vector<16x1xf32>
    %4 = arith.divf %2, %3 : vector<16x1xf32>
    %5 = vector.broadcast %4 : vector<16x1xf32> to vector<16x128xf32>
    %6 = arith.subf %0, %5 : vector<16x128xf32>
    %7 = arith.mulf %6, %6 : vector<16x128xf32>
    %cst_2 = arith.constant dense<0.000000e+00> : vector<16xf32>
    %8 = vector.multi_reduction <add>, %7, %cst_2 [1] : vector<16x128xf32> to vector<16xf32>
    %9 = vector.shape_cast %8 : vector<16xf32> to vector<16x1xf32>
    %cst_3 = arith.constant 0.00787401571 : f32
    %10 = vector.broadcast %cst_3 : f32 to vector<16x1xf32>
    %11 = arith.mulf %9, %10 : vector<16x1xf32>
    %12 = math.sqrt %11 : vector<16x1xf32>
    %cst_4 = arith.constant 9.99999997E-7 : f32
    %13 = vector.broadcast %cst_4 : f32 to vector<16x1xf32>
    %14 = arith.addf %12, %13 : vector<16x1xf32>
    %cst_5 = arith.constant 1.000000e+00 : f32
    %15 = vector.broadcast %cst_5 : f32 to vector<16x1xf32>
    %16 = arith.divf %15, %14 : vector<16x1xf32>
    %c0_6 = arith.constant 0 : index
    %c0_7 = arith.constant 0 : index
    %17 = vector.load %arg2[%c0_6, %c0_7] : memref<1x128xf32, #tpu.memory_space<vmem>>, vector<1x128xf32>
    %18 = vector.broadcast %16 : vector<16x1xf32> to vector<16x128xf32>
    %19 = arith.mulf %6, %18 : vector<16x128xf32>
    %20 = vector.broadcast %17 : vector<1x128xf32> to vector<16x128xf32>
    %21 = arith.mulf %20, %19 : vector<16x128xf32>
    %c0_8 = arith.constant 0 : index
    %c0_9 = arith.constant 0 : index
    %22 = vector.load %arg3[%c0_8, %c0_9] : memref<1x128xf32, #tpu.memory_space<vmem>>, vector<1x128xf32>
    %23 = vector.broadcast %22 : vector<1x128xf32> to vector<16x128xf32>
    %24 = arith.addf %21, %23 : vector<16x128xf32>
    %25 = arith.truncf %24 : vector<16x128xf32> to vector<16x128xbf16>
    %c0_10 = arith.constant 0 : index
    %c0_11 = arith.constant 0 : index
    %26 = vector.load %arg4[%c0_10, %c0_11] : memref<128x128xbf16, #tpu.memory_space<vmem>>, vector<128x128xbf16>
    %cst_12 = arith.constant dense<0.000000e+00> : vector<16x128xf32>
    %27 = tpu.matmul %25, %26, %cst_12 {dimension_numbers = #tpu.dot_dimension_numbers<[1], [0], [0], [1], [0, 0, 1, 1], [], []>} : vector<16x128xbf16>, vector<128x128xbf16>, vector<16x128xf32> -> vector<16x128xf32>
    %c0_13 = arith.constant 0 : index
    %c0_14 = arith.constant 0 : index
    %28 = vector.load %arg5[%c0_13, %c0_14] : memref<1x128xf32, #tpu.memory_space<vmem>>, vector<1x128xf32>
    %29 = vector.broadcast %28 : vector<1x128xf32> to vector<16x128xf32>
    %30 = arith.addf %27, %29 : vector<16x128xf32>
    %31 = arith.addf %0, %30 : vector<16x128xf32>
    %c0_15 = arith.constant 0 : index
    %c0_16 = arith.constant 0 : index
    %32 = vector.load %arg6[%c0_15, %c0_16] : memref<16x128xf32, #tpu.memory_space<vmem>>, vector<16x128xf32>
    tpu.vector_store %arg6[%c0_15, %c0_16], %31 {strides = array<i32>} : memref<16x128xf32, #tpu.memory_space<vmem>>, vector<16x128xf32>,
    return
  }
  func.func @transform_0(%arg0: i32) -> (i32, i32) {
    %c0_i32 = arith.constant 0 : i32
    %c0_i32_0 = arith.constant 0 : i32
    return %arg0, %c0_i32 : i32, i32
  }
  func.func @transform_1(%arg0: i32) -> (i32, i32) {
    %c0_i32 = arith.constant 0 : i32
    %c0_i32_0 = arith.constant 0 : i32
    %c0_i32_1 = arith.constant 0 : i32
    return %c0_i32, %c0_i32_0 : i32, i32
  }
  func.func @transform_2(%arg0: i32) -> (i32, i32) {
    %c0_i32 = arith.constant 0 : i32
    %c0_i32_0 = arith.constant 0 : i32
    %c0_i32_1 = arith.constant 0 : i32
    return %c0_i32, %c0_i32_0 : i32, i32
  }
  func.func @transform_3(%arg0: i32) -> (i32, i32) {
    %c0_i32 = arith.constant 0 : i32
    %c0_i32_0 = arith.constant 0 : i32
    %c0_i32_1 = arith.constant 0 : i32
    return %c0_i32, %c0_i32_0 : i32, i32
  }
  func.func @transform_4(%arg0: i32) -> (i32, i32) {
    %c0_i32 = arith.constant 0 : i32
    %c0_i32_0 = arith.constant 0 : i32
    %c0_i32_1 = arith.constant 0 : i32
    return %c0_i32, %c0_i32_0 : i32, i32
  }
  func.func @transform_5(%arg0: i32) -> (i32, i32) {
    %c0_i32 = arith.constant 0 : i32
    %c0_i32_0 = arith.constant 0 : i32
    return %arg0, %c0_i32 : i32, i32
  }
}

</mosaic_0001>

<llo_original>
// kernel: tpu_custom_call.1
$region0: #{tpu_custom_call.1}
  #allocation0 [shape = 'u32[]', space=smem, size = 0x4, offset = 0x4, fixed_abs, tag = 'smem constant byte address 0x4 - core index']
  #allocation1 [shape = 'u32[144,128]{1,0:T(1,128)}', space=vmem, size = 0x12000, scoped, tag = 'internal scratch']
  %s0 = inlined_call_operand.hbm [shape: f32[16,128], index: 0, kind: input, shape index: {}]
  %s1 = inlined_call_operand.vmem [shape: f32[1,128], index: 1, kind: input, shape index: {}]
  %s2 = inlined_call_operand.vmem [shape: f32[1,128], index: 2, kind: input, shape index: {}]
  %s3 = inlined_call_operand.hbm [shape: bf16[128,128], index: 3, kind: input, shape index: {}]
  %s4 = inlined_call_operand.vmem [shape: f32[1,128], index: 4, kind: input, shape index: {}]
  %s5 = inlined_call_operand.hbm [shape: f32[16,128], index: 5, kind: output, shape index: {}]
  %s6 = sld [smem:[#allocation0]]
  $region38: #{tpu_custom_call.1} parent=0
    _
  %s8 = ssub.s32 1, %s6
  %s9 = scalar_select 0, %s8, %s6
  $region1: #{tpu_custom_call.1} parent=0
    #allocation2 [shape = 'u8[8192]{0}', space=vmem, size = 0x2000, scoped, tag = 'input window, operand 0, single buffered']
    #allocation3 [shape = 's32[1]{0}', space=sflag, size = 0x4, scoped, tag = 'scoped memory for tpu_custom_call.1']
    #allocation4 [shape = 's32[1]{0}', space=sflag, size = 0x4, scoped, tag = 'scoped memory for tpu_custom_call.1']
    #allocation5 [shape = 'u8[32768]{0}', space=vmem, size = 0x8000, scoped, tag = 'input window, operand 3, single buffered']
    #allocation6 [shape = 's32[1]{0}', space=sflag, size = 0x4, scoped, tag = 'scoped memory for tpu_custom_call.1']
    #allocation7 [shape = 'u8[8192]{0}', space=vmem, size = 0x2000, scoped, tag = 'output window, operand 0, single buffered']
    %10 = vsyncpa [#allocation3], 0
    %11 = vsyncpa [#allocation6], 0
    %12 = vsyncpa [#allocation4], 0
    // Predicated region
    $region2: #{tpu_custom_call.1} parent=1 // pred_check
      _
    $region3: #{tpu_custom_call.1} parent=1 // pred_check_branch
      %14 = sbr.rel (0) target = $region5
    $region4: #{tpu_custom_call.1} parent=1 // pred_region
      %s16 = ssub.s32 256, 256
      %17 = vsyncadd [#allocation3], %s16
      %s18 = sshll.u32 [#allocation2], 4
      %s19 = int_to_ptr.vmem [resolvable:$true] %s18
      %24 = dma.hbm_to_vmem [thread:$0]  %s0, 256, %s19, [#allocation3], 128, 128, 8
    $region5: #{tpu_custom_call.1} parent=1 // pred_fallthru
      _
    // Predicated region
    $region6: #{tpu_custom_call.1} parent=1 // pred_check
      _
    $region7: #{tpu_custom_call.1} parent=1 // pred_check_branch
      %26 = sbr.rel (0) target = $region9
    $region8: #{tpu_custom_call.1} parent=1 // pred_region
      _
    $region9: #{tpu_custom_call.1} parent=1 // pred_fallthru
      _
    // Predicated region
    $region10: #{tpu_custom_call.1} parent=1 // pred_check
      _
    $region11: #{tpu_custom_call.1} parent=1 // pred_check_branch
      %28 = sbr.rel (0) target = $region13
    $region12: #{tpu_custom_call.1} parent=1 // pred_region
      _
    $region13: #{tpu_custom_call.1} parent=1 // pred_fallthru
      _
    // Predicated region
    $region14: #{tpu_custom_call.1} parent=1 // pred_check
      _
    $region15: #{tpu_custom_call.1} parent=1 // pred_check_branch
      %30 = sbr.rel (0) target = $region17
    $region16: #{tpu_custom_call.1} parent=1 // pred_region
      %s32 = ssub.s32 1024, 1024
      %33 = vsyncadd [#allocation6], %s32
      %s34 = sshll.u32 [#allocation5], 4
      %s35 = int_to_ptr.vmem [resolvable:$true] %s34
      %40 = dma.hbm_to_vmem [thread:$0]  %s3, 1024, %s35, [#allocation6], 64, 64, 4
    $region17: #{tpu_custom_call.1} parent=1 // pred_fallthru
      _
    // Predicated region
    $region18: #{tpu_custom_call.1} parent=1 // pred_check
      _
    $region19: #{tpu_custom_call.1} parent=1 // pred_check_branch
      %42 = sbr.rel (0) target = $region21
    $region20: #{tpu_custom_call.1} parent=1 // pred_region
      _
    $region21: #{tpu_custom_call.1} parent=1 // pred_fallthru
      _
    // Predicated region
    $region22: #{tpu_custom_call.1} parent=1 // pred_check
      _
    $region23: #{tpu_custom_call.1} parent=1 // pred_check_branch
      %44 = sbr.rel (0) target = $region25
    $region24: #{tpu_custom_call.1} parent=1 // pred_region
      %45 = dma.done [#allocation3], 256
    $region25: #{tpu_custom_call.1} parent=1 // pred_fallthru
      _
    // Predicated region
    $region26: #{tpu_custom_call.1} parent=1 // pred_check
      _
    $region27: #{tpu_custom_call.1} parent=1 // pred_check_branch
      %47 = sbr.rel (0) target = $region29
    $region28: #{tpu_custom_call.1} parent=1 // pred_region
      %48 = dma.done [#allocation6], 1024
    $region29: #{tpu_custom_call.1} parent=1 // pred_fallthru
      _
    %v50 = vld [vmem:[#allocation2] sm:$0xff]
    %v51 = vld [vmem:[#allocation2 + $0x8] sm:$0xff]
    %52 = vadd.xlane.f32.xlu0 %v50
    %v53 = vpop.xlane.xlu0 %52
    %54 = vadd.xlane.f32.xlu0 %v51
    %v55 = vpop.xlane.xlu0 %54
    %v56 = vrcp.pop 128.0
    %v57 = vmul.f32 %v53, %v56
    %v58 = vmul.f32 %v55, %v56
    %v59 = vsub.f32 %v50, %v57
    %v60 = vsub.f32 %v51, %v58
    %v61 = vmul.f32 %v59, %v59
    %v62 = vmul.f32 %v60, %v60
    %63 = vadd.xlane.f32.xlu0 %v61
    %v64 = vpop.xlane.xlu0 %63
    %65 = vadd.xlane.f32.xlu0 %v62
    %v66 = vpop.xlane.xlu0 %65
    %v67 = vmul.f32 %v64, 0.007874016
    %v68 = vmul.f32 %v66, 0.007874016
    %v69 = vrsqrt.pop %v67
    %v70 = vmul.f32 %v67, %v69
    %vm71 = vcmp.eq.f32.partialorder %v67, inf
    %v72 = vsel %vm71, %v67, %v70
    %vm73 = vcmp.eq.f32.partialorder %v67, 0.0
    %v74 = vand.u32 %v67, 2147483648
    %v75 = vsel %vm73, %v74, %v72
    %v76 = vrsqrt.pop %v68
    %v77 = vmul.f32 %v68, %v76
    %vm78 = vcmp.eq.f32.partialorder %v68, inf
    %v79 = vsel %vm78, %v68, %v77
    %vm80 = vcmp.eq.f32.partialorder %v68, 0.0
    %v81 = vand.u32 %v68, 2147483648
    %v82 = vsel %vm80, %v81, %v79
    %v83 = vadd.f32 %v75, 1e-06
    %v84 = vadd.f32 %v82, 1e-06
    %v85 = vrcp.pop %v83
    %v86 = vmul.f32 1.0, %v85
    %v87 = vrcp.pop %v84
    %v88 = vmul.f32 1.0, %v87
    %v89 = vld [vmem:[%s1] sm:$0x1]
    %v90 = vmul.f32 %v59, %v86
    %v91 = vmul.f32 %v60, %v88
    %v93 = vlaneseq
    %v94 = vshrl.u32 %v93, 7
    %v95 = vsub.s32 0, %v94
    %v96 = vrot.slane %v89, %v95
    %v98 = vmul.f32 %v96, %v90
    %v99 = vmul.f32 %v96, %v91
    %v100 = vld [vmem:[%s2] sm:$0x1]
    %v102 = vlaneseq
    %v103 = vshrl.u32 %v102, 7
    %v104 = vsub.s32 0, %v103
    %v105 = vrot.slane %v100, %v104
    %v107 = vadd.f32 %v98, %v105
    %v108 = vadd.f32 %v99, %v105
    %v109 = vpack.c.bf16 %v108, %v107
    %v110 = vld [vmem:[#allocation5] sm:$0xf]
    %v111 = vld [vmem:[#allocation5 + $0x4] sm:$0xf]
    %v112 = vld [vmem:[#allocation5 + $0x8] sm:$0xf]
    %v113 = vld [vmem:[#allocation5 + $0xc] sm:$0xf]
    %v114 = vld [vmem:[#allocation5 + $0x10] sm:$0xf]
    %v115 = vld [vmem:[#allocation5 + $0x14] sm:$0xf]
    %v116 = vld [vmem:[#allocation5 + $0x18] sm:$0xf]
    %v117 = vld [vmem:[#allocation5 + $0x1c] sm:$0xf]
    %v118 = vld [vmem:[#allocation5 + $0x20] sm:$0xf]
    %v119 = vld [vmem:[#allocation5 + $0x24] sm:$0xf]
    %v120 = vld [vmem:[#allocation5 + $0x28] sm:$0xf]
    %v121 = vld [vmem:[#allocation5 + $0x2c] sm:$0xf]
    %v122 = vld [vmem:[#allocation5 + $0x30] sm:$0xf]
    %v123 = vld [vmem:[#allocation5 + $0x34] sm:$0xf]
    %v124 = vld [vmem:[#allocation5 + $0x38] sm:$0xf]
    %v125 = vld [vmem:[#allocation5 + $0x3c] sm:$0xf]
    %v126 = vld [vmem:[%s4] sm:$0x1]
    %v128 = vlaneseq
    %v129 = vshrl.u32 %v128, 7
    %v130 = vsub.s32 0, %v129
    %v131 = vrot.slane %v126, %v130
    %v149 = vunpack.c.l.b16 %v110
    %v150 = vunpack.c.l.b16 %v111
    %v151 = vunpack.c.l.b16 %v112
    %v152 = vunpack.c.l.b16 %v113
    %v153 = vunpack.c.l.b16 %v114
    %v154 = vunpack.c.l.b16 %v115
    %v155 = vunpack.c.l.b16 %v116
    %v156 = vunpack.c.l.b16 %v117
    %v157 = vunpack.c.l.b16 %v118
    %v158 = vunpack.c.l.b16 %v119
    %v159 = vunpack.c.l.b16 %v120
    %v160 = vunpack.c.l.b16 %v121
    %v161 = vunpack.c.l.b16 %v122
    %v162 = vunpack.c.l.b16 %v123
    %v163 = vunpack.c.l.b16 %v124
    %v164 = vunpack.c.l.b16 %v125
    %v165 = vpack.c.b16 %v150, %v149
    %v166 = vpack.c.b16 %v152, %v151
    %v167 = vpack.c.b16 %v154, %v153
    %v168 = vpack.c.b16 %v156, %v155
    %v169 = vpack.c.b16 %v158, %v157
    %v170 = vpack.c.b16 %v160, %v159
    %v171 = vpack.c.b16 %v162, %v161
    %v172 = vpack.c.b16 %v164, %v163
    %181 = vmatprep.subr.bf16.mxu0 0
    %182 = vmatpush1.bf16.msra.mxu0 %v172
    %183 = vmatprep.subr.bf16.mxu0 0
    %184 = vmatpush1.bf16.msra.mxu0 %v171
    %185 = vmatprep.subr.bf16.mxu0 0
    %186 = vmatpush1.bf16.msra.mxu0 %v170
    %187 = vmatprep.subr.bf16.mxu0 0
    %188 = vmatpush1.bf16.msra.mxu0 %v169
    %189 = vmatprep.subr.bf16.mxu0 0
    %190 = vmatpush1.bf16.msra.mxu0 %v168
    %191 = vmatprep.subr.bf16.mxu0 0
    %192 = vmatpush1.bf16.msra.mxu0 %v167
    %193 = vmatprep.subr.bf16.mxu0 0
    %194 = vmatpush1.bf16.msra.mxu0 %v166
    %195 = vmatprep.subr.bf16.mxu0 0
    %196 = vmatpush1.bf16.msra.mxu0 %v165
    %197 = vmatprep.subr.bf16.mxu0 0
    %198 = vmatpush2.bf16.msra.mxu0 0
    %199 = vmatprep.subr.bf16.mxu0 0
    %200 = vmatpush2.bf16.msra.mxu0 0
    %201 = vmatprep.subr.bf16.mxu0 0
    %202 = vmatpush2.bf16.msra.mxu0 0
    %203 = vmatprep.subr.bf16.mxu0 0
    %204 = vmatpush2.bf16.msra.mxu0 0
    %205 = vmatprep.subr.bf16.mxu0 0
    %206 = vmatpush2.bf16.msra.mxu0 0
    %207 = vmatprep.subr.bf16.mxu0 0
    %208 = vmatpush2.bf16.msra.mxu0 0
    %209 = vmatprep.subr.bf16.mxu0 0
    %210 = vmatpush2.bf16.msra.mxu0 0
    %211 = vmatprep.subr.bf16.mxu0 0
    %212 = vmatpush2.bf16.msra.mxu0 0
    %213 = vmatprep.mubr.bf16.mxu0 0
    %214 = vmatmul.mubr.bf16.gmra.mxu0 %v109
    %v215 = vpop.f32.mrf.mxu0
    %v216 = vadd.f32 %v131, %v215
    %v217 = vpop.f32.mrf.mxu0
    %v218 = vpop.f32.mrf.mxu0
    %v219 = vadd.f32 %v131, %v218
    %v220 = vpop.f32.mrf.mxu0
    %221 = vdwg.mxu0
    %v222 = vadd.f32 %v50, %v216
    %v223 = vadd.f32 %v51, %v219
    %224 = vst [vmem:[#allocation7] sm:$0xff] %v222
    %225 = vst [vmem:[#allocation7 + $0x8] sm:$0xff] %v223
    // Predicated region
    $region30: #{tpu_custom_call.1} parent=1 // pred_check
      _
    $region31: #{tpu_custom_call.1} parent=1 // pred_check_branch
      %227 = sbr.rel (0) target = $region33
    $region32: #{tpu_custom_call.1} parent=1 // pred_region
      %s229 = ssub.s32 256, 256
      %230 = vsyncadd [#allocation4], %s229
      %s231 = sshll.u32 [#allocation7], 4
      %s232 = int_to_ptr.vmem [resolvable:$true] %s231
      %237 = dma.vmem_to_hbm [thread:$0]  %s232, 256, %s5, [#allocation4], 128, 128, 8
    $region33: #{tpu_custom_call.1} parent=1 // pred_fallthru
      _
    // Predicated region
    $region34: #{tpu_custom_call.1} parent=1 // pred_check
      _
    $region35: #{tpu_custom_call.1} parent=1 // pred_check_branch
      %239 = sbr.rel (0) target = $region37
    $region36: #{tpu_custom_call.1} parent=1 // pred_region
      %240 = dma.done [#allocation4], 256
    $region37: #{tpu_custom_call.1} parent=1 // pred_fallthru
      _
    %241 = vsyncpa [#allocation3], 1
    %242 = vsyncpa [#allocation6], 1
    %243 = vsyncpa [#allocation4], 1

</llo_original>
